<compile_context>
chip_gen: v7x
topology: tpu7x:2x2x1
jax: 0.10.0
libtpu: 0.0.40
codegen_flags: <defaults>
</compile_context>

<pallas_src>
import jax
import jax.numpy as jnp
import numpy as np
from jax.experimental import pallas as pl
from jax.experimental.pallas import tpu as pltpu


def _round_up(v, m):
    return ((v + m - 1) // m) * m


def _cparams(semantics, block_bytes, scratch_bytes=0):
    """CompilerParams with a VMEM limit sized from the actual blocks.

    block_bytes are per-block sizes (double-buffering is accounted for here);
    scratch_bytes is single-buffered scratch. Generous headroom is added.
    """
    est = 2 * sum(block_bytes) + scratch_bytes
    limit = int(min(96 * 2 ** 20, max(32 * 2 ** 20, est + est // 2 + (4 << 20))))
    return pltpu.CompilerParams(dimension_semantics=semantics,
                                vmem_limit_bytes=limit)


def _build_pool_upsample_mats(h, w, sizes, k_pad):
    """Pooling / upsample matrices for all pyramid stages.

    Returns:
      a:   (H*W, K) adaptive-avg-pool matrix (columns = pooled bins, 1/area)
      u:   (H*W, K) bilinear align_corners=True interpolation matrix
      seg: (len(sizes), K) 0/1 mask marking which K columns belong to a stage
    """
    hw = h * w
    a = np.zeros((hw, k_pad), np.float32)
    u = np.zeros((hw, k_pad), np.float32)
    seg = np.zeros((len(sizes), k_pad), np.float32)
    off = 0
    for si, s in enumerate(sizes):
        seg[si, off:off + s * s] = 1.0
        # adaptive average pooling, PyTorch bin boundaries
        for by in range(s):
            h0, h1 = (by * h) // s, ((by + 1) * h + s - 1) // s
            for bx in range(s):
                w0, w1 = (bx * w) // s, ((bx + 1) * w + s - 1) // s
                inv_area = 1.0 / float((h1 - h0) * (w1 - w0))
                col = off + by * s + bx
                for yy in range(h0, h1):
                    a[yy * w + w0:yy * w + w1, col] = inv_area
        # bilinear upsample, align_corners=True
        for y in range(h):
            sy = 0.0 if s == 1 else y * (s - 1) / (h - 1)
            y0 = int(np.floor(sy)); y1 = min(y0 + 1, s - 1); wy = sy - y0
            for xx in range(w):
                sx = 0.0 if s == 1 else xx * (s - 1) / (w - 1)
                x0 = int(np.floor(sx)); x1 = min(x0 + 1, s - 1); wx = sx - x0
                p = y * w + xx
                u[p, off + y0 * s + x0] += (1 - wy) * (1 - wx)
                u[p, off + y0 * s + x1] += (1 - wy) * wx
                u[p, off + y1 * s + x0] += wy * (1 - wx)
                u[p, off + y1 * s + x1] += wy * wx
        off += s * s
    return a, u, seg


def psp_module_forward(x, stage_weights, bottleneck_weight, gamma, beta,
                       running_mean, running_var, eps=1e-5, sizes=(1, 2, 3, 6),
                       hw_tile=512, hwp_tile=512, ch_tile=None, cout_tile=None):
    """PSPModule forward (inference).

    x:                 (N, Cin, H, W)   NCHW, PyTorch convention
    stage_weights:     list of (Cout, Cin, 1, 1), one per size in `sizes`
    bottleneck_weight: (Cout, Cin + len(sizes)*Cout, 3, 3)
    gamma/beta/running_mean/running_var: (Cout,) BatchNorm2d (inference)
    Returns (N, Cout, H, W).
    """
    n, cin, h, w = x.shape
    cout = stage_weights[0].shape[0]
    ns = len(sizes)
    nsc = ns * cout                       # stage (prior) channels
    hw = h * w
    rs = w + 2                            # row stride of the halo-padded layout
    hwp_core = (h + 2) * rs               # (H+2) x (W+2) halo-padded extent
    l_out = h * rs                        # conv output length in padded layout
    ktot = sum(s * s for s in sizes)
    k = _round_up(max(ktot, 128), 128)    # pooled-bin axis, lane-dense
    out_dt = x.dtype
    cdt = jnp.bfloat16                    # MXU operand dtype (f32 accumulation)

    # ---- tiling: zero-pad spatial axes to tile multiples (no one-tile fallback) ----
    hw_tile = min(_round_up(max(hw_tile, 128), 128), _round_up(hw, 128))
    hw_pad = _round_up(hw, hw_tile)
    n_hw = hw_pad // hw_tile

    hwp_need = hwp_core + 2               # +2: last tap offset of last output row
    hwp_tile = min(_round_up(max(hwp_tile, 128), 128), _round_up(hwp_need, 128))
    hwp = _round_up(hwp_need, hwp_tile)
    n_hwp = hwp // hwp_tile

    if ch_tile is None:
        ch_tile = min(256, _round_up(max(cin, nsc), 8))
    ch_tile = _round_up(ch_tile, 8)
    nsc_pad = _round_up(nsc, ch_tile)
    cin_pad = _round_up(cin, ch_tile)
    n_ct_pri = nsc_pad // ch_tile
    n_ct_x = cin_pad // ch_tile
    n_ct = n_ct_pri + n_ct_x

    if cout_tile is None:
        cout_tile = min(256, _round_up(cout, 8))
    cout_tile = min(_round_up(cout_tile, 8), _round_up(cout, 8))
    cout_pad = _round_up(cout, cout_tile)
    n_co = cout_pad // cout_tile

    # ---- small constant matrices (pool / upsample), built once on host, bf16 ----
    a_np, u_np, seg_np = _build_pool_upsample_mats(h, w, sizes, k)
    a_pad = np.zeros((hw_pad, k), np.float32)
    a_pad[:hw] = a_np
    a_mat = jnp.asarray(a_pad, dtype=cdt)                           # (HWpad, K)

    u_halo = np.zeros((h + 2, rs, k), np.float32)
    u_halo[1:h + 1, 1:w + 1] = u_np.reshape(h, w, k)                # halo pixels -> 0
    u_flat = np.zeros((hwp, k), np.float32)
    u_flat[:hwp_core] = u_halo.reshape(hwp_core, k)
    u_t = jnp.asarray(np.ascontiguousarray(u_flat.T), dtype=cdt)    # (K, HWp)

    seg_pad = np.zeros((nsc_pad, k), np.float32)
    seg_pad[:nsc] = np.repeat(seg_np, cout, axis=0)
    seg_mask = jnp.asarray(seg_pad, dtype=cdt)                      # (nsc_pad, K)

    # ---- parameters (bf16 operands; BN scale folded into the 3x3 weights) ----
    w_stage = jnp.concatenate(
        [jnp.reshape(sw, (cout, cin)) for sw in stage_weights], axis=0)
    w_stage = jnp.pad(w_stage, ((0, nsc_pad - nsc), (0, 0))).astype(cdt)

    scale = (gamma / jnp.sqrt(running_var + eps)).astype(jnp.float32)
    shift = (beta - running_mean * scale).astype(jnp.float32)
    shift_p = jnp.pad(shift, (0, cout_pad - cout)).reshape(cout_pad, 1)

    wb = bottleneck_weight.astype(jnp.float32) * scale[:, None, None, None]
    wb_pri = jnp.pad(wb[:, :nsc],
                     ((0, cout_pad - cout), (0, nsc_pad - nsc), (0, 0), (0, 0)))
    wb_x = jnp.pad(wb[:, nsc:],
                   ((0, cout_pad - cout), (0, cin_pad - cin), (0, 0), (0, 0)))
    wb_all = jnp.concatenate([wb_pri, wb_x], axis=1)   # (cout_pad, n_ct*ch_tile, 3, 3)
    # (n_ct, 9, cout_pad, ch_tile): blocked input-channel axis leading so the
    # last two block dims stay full / 8-aligned.
    wb_t = wb_all.reshape(cout_pad, n_ct, ch_tile, 9).transpose(1, 3, 0, 2).astype(cdt)

    # ---- inputs: NCHW, flattened spatial on the lane axis, bf16 ----
    x_flat = jnp.pad(x.reshape(n, cin, hw),
                     ((0, 0), (0, 0), (0, hw_pad - hw))).astype(cdt)
    x_halo = jnp.pad(x, ((0, 0), (0, cin_pad - cin), (1, 1), (1, 1))
                     ).reshape(n, cin_pad, hwp_core)
    x_halo = jnp.pad(x_halo, ((0, 0), (0, 0), (0, hwp - hwp_core))).astype(cdt)

    # ------- kernel 1: adaptive pool (HW-tiled MXU reduce) + 1x1 stage convs -------
    def _pool_stage_kernel(x_ref, a_ref, w_ref, m_ref, y_ref, acc_ref):
        t = pl.program_id(1)

        @pl.when(t == 0)
        def _init():
            acc_ref[...] = jnp.zeros_like(acc_ref)

        # partial spatial sums on the bf16 MXU; f32 accumulation
        acc_ref[...] += jnp.dot(x_ref[0], a_ref[...],
                                preferred_element_type=jnp.float32)

        @pl.when(t == pl.num_programs(1) - 1)
        def _finalize():
            y = jnp.dot(w_ref[...], acc_ref[...].astype(cdt),
                        preferred_element_type=jnp.float32)          # (nsc_pad, K)
            y_ref[0] = (y * m_ref[...]).astype(y_ref.dtype)          # own-stage bins only

    k1_blocks = (cin * hw_tile * 2, hw_tile * k * 2, nsc_pad * cin * 2,
                 nsc_pad * k * 2, nsc_pad * k * 2)
    y_stage = pl.pallas_call(
        _pool_stage_kernel,
        out_shape=jax.ShapeDtypeStruct((n, nsc_pad, k), cdt),
        grid_spec=pltpu.PrefetchScalarGridSpec(
            num_scalar_prefetch=0,
            grid=(n, n_hw),
            in_specs=[
                pl.BlockSpec((1, cin, hw_tile), lambda b, t: (b, 0, t)),
                pl.BlockSpec((hw_tile, k), lambda b, t: (t, 0)),
                pl.BlockSpec((nsc_pad, cin), lambda b, t: (0, 0)),
                pl.BlockSpec((nsc_pad, k), lambda b, t: (0, 0)),
            ],
            out_specs=pl.BlockSpec((1, nsc_pad, k), lambda b, t: (b, 0, 0)),
            scratch_shapes=[pltpu.VMEM((cin, k), jnp.float32)],
        ),
        compiler_params=_cparams(("parallel", "arbitrary"), k1_blocks, cin * k * 4),
    )(x_flat, a_mat, w_stage, seg_mask)

    # ------- kernel 2: bilinear upsample (align_corners=True), priors only -------
    def _upsample_kernel(y_ref, u_ref, o_ref):
        o_ref[0] = jnp.dot(y_ref[0], u_ref[...],
                           preferred_element_type=jnp.float32).astype(o_ref.dtype)

    k2_blocks = (nsc_pad * k * 2, k * hwp_tile * 2, nsc_pad * hwp_tile * 2)
    pri = pl.pallas_call(
        _upsample_kernel,
        out_shape=jax.ShapeDtypeStruct((n, nsc_pad, hwp), cdt),
        grid_spec=pltpu.PrefetchScalarGridSpec(
            num_scalar_prefetch=0,
            grid=(n, n_hwp),
            in_specs=[
                pl.BlockSpec((1, nsc_pad, k), lambda b, r: (b, 0, 0)),
                pl.BlockSpec((k, hwp_tile), lambda b, r: (0, r)),
            ],
            out_specs=pl.BlockSpec((1, nsc_pad, hwp_tile), lambda b, r: (b, 0, r)),
        ),
        compiler_params=_cparams(("parallel", "parallel"), k2_blocks),
    )(y_stage, u_t)

    # ------- kernel 3: 3x3 conv, dual-source channel-tiled MXU reduce + folded BN -------
    def _bottleneck_kernel(pri_ref, x_ref, w_ref, s_ref, o_ref, acc_ref):
        c = pl.program_id(2)

        @pl.when(c == 0)
        def _init():
            acc_ref[...] = jnp.zeros_like(acc_ref)

        def _accumulate(src_ref):
            # 9 shifted taps, accumulated straight into the scratch (no temp);
            # halo padding makes every shifted slice valid without wrap masks.
            for tap in range(9):
                off = (tap // 3) * rs + (tap % 3)
                acc_ref[...] += jnp.dot(w_ref[0, tap],
                                        src_ref[0, :, off:off + l_out],
                                        preferred_element_type=jnp.float32)

        @pl.when(c < n_ct_pri)            # prior-channel segment of the reduction
        def _do_pri():
            _accumulate(pri_ref)

        @pl.when(c >= n_ct_pri)           # input-x channel segment
        def _do_x():
            _accumulate(x_ref)

        @pl.when(c == pl.num_programs(2) - 1)
        def _finalize():
            o_ref[0] = (acc_ref[...] + s_ref[...]).astype(o_ref.dtype)

    out_isz = np.dtype(out_dt).itemsize
    k3_blocks = (ch_tile * hwp * 2, ch_tile * hwp * 2,
                 9 * cout_tile * ch_tile * 2, cout_tile * 4,
                 cout_tile * l_out * out_isz)
    out_full = pl.pallas_call(
        _bottleneck_kernel,
        out_shape=jax.ShapeDtypeStruct((n, cout_pad, l_out), out_dt),
        grid_spec=pltpu.PrefetchScalarGridSpec(
            num_scalar_prefetch=0,
            grid=(n, n_co, n_ct),
            in_specs=[
                # priors: revisit the last block while the x segment runs (no re-DMA)
                pl.BlockSpec((1, ch_tile, hwp),
                             lambda b, co, c: (b, jnp.minimum(c, n_ct_pri - 1), 0)),
                # x: parked at block 0 while the prior segment runs (no re-DMA)
                pl.BlockSpec((1, ch_tile, hwp),
                             lambda b, co, c: (b, jnp.maximum(c - n_ct_pri, 0), 0)),
                pl.BlockSpec((1, 9, cout_tile, ch_tile),
                             lambda b, co, c: (c, 0, co, 0)),
                pl.BlockSpec((cout_tile, 1), lambda b, co, c: (co, 0)),
            ],
            out_specs=pl.BlockSpec((1, cout_tile, l_out), lambda b, co, c: (b, co, 0)),
            scratch_shapes=[pltpu.VMEM((cout_tile, l_out), jnp.float32)],
        ),
        compiler_params=_cparams(("parallel", "parallel", "arbitrary"),
                                 k3_blocks, cout_tile * l_out * 4),
    )(pri, x_halo, wb_t, shift_p)

    # drop padded cout rows and the 2 garbage halo columns per output row
    out = out_full[:, :cout].reshape(n, cout, h, rs)[..., :w]
    return out.astype(out_dt)


# --------------------------- pure-JAX reference ---------------------------
def _adaptive_avg_pool_ref(x, s):
    _, _, h, w = x.shape
    rows = []
    for i in range(s):
        h0, h1 = (i * h) // s, ((i + 1) * h + s - 1) // s
        cols = []
        for j in range(s):
            w0, w1 = (j * w) // s, ((j + 1) * w + s - 1) // s
            cols.append(jnp.mean(x[:, :, h0:h1, w0:w1], axis=(2, 3)))
        rows.append(jnp.stack(cols, axis=-1))
    return jnp.stack(rows, axis=-2)                  # (N, C, s, s)


def _upsample_bilinear_ac_ref(x, h, w):
    n, c, s, _ = x.shape
    if s == 1:
        return jnp.broadcast_to(x, (n, c, h, w))
    sy = jnp.arange(h, dtype=jnp.float32) * (s - 1) / (h - 1)
    sx = jnp.arange(w, dtype=jnp.float32) * (s - 1) / (w - 1)
    y0 = jnp.floor(sy).astype(jnp.int32); y1 = jnp.minimum(y0 + 1, s - 1); wy = sy - y0
    x0 = jnp.floor(sx).astype(jnp.int32); x1 = jnp.minimum(x0 + 1, s - 1); wx = sx - x0
    v00 = x[:, :, y0][:, :, :, x0]
    v01 = x[:, :, y0][:, :, :, x1]
    v10 = x[:, :, y1][:, :, :, x0]
    v11 = x[:, :, y1][:, :, :, x1]
    wy = wy[None, None, :, None]; wx = wx[None, None, None, :]
    return (v00 * (1 - wy) * (1 - wx) + v01 * (1 - wy) * wx
            + v10 * wy * (1 - wx) + v11 * wy * wx)


def _psp_reference(x, stage_weights, bottleneck_weight, gamma, beta,
                   running_mean, running_var, eps=1e-5, sizes=(1, 2, 3, 6)):
    n, cin, h, w = x.shape
    priors = []
    for s, ws in zip(sizes, stage_weights):
        pooled = _adaptive_avg_pool_ref(x, s)
        y = jnp.einsum('oi,nixy->noxy', ws[:, :, 0, 0], pooled)
        priors.append(_upsample_bilinear_ac_ref(y, h, w))
    priors.append(x)
    cat = jnp.concatenate(priors, axis=1)
    conv = jax.lax.conv_general_dilated(
        cat, bottleneck_weight, window_strides=(1, 1), padding=((1, 1), (1, 1)),
        dimension_numbers=('NCHW', 'OIHW', 'NCHW'))
    scale = gamma / jnp.sqrt(running_var + eps)
    shift = beta - running_mean * scale
    return conv * scale[None, :, None, None] + shift[None, :, None, None]


if __name__ == "__main__":
    key = jax.random.PRNGKey(0)
    ks = jax.random.split(key, 10)

    N, C_IN, C_OUT, H, W = 2, 4, 16, 16, 16
    SIZES = (1, 2, 3, 6)
    C_TOT = C_IN + len(SIZES) * C_OUT

    x = jax.random.normal(ks[0], (N, C_IN, H, W), dtype=jnp.float32)
    stage_ws = [0.2 * jax.random.normal(ks[1 + i], (C_OUT, C_IN, 1, 1), dtype=jnp.float32)
                for i in range(len(SIZES))]
    wb = 0.1 * jax.random.normal(ks[5], (C_OUT, C_TOT, 3, 3), dtype=jnp.float32)
    gamma = 1.0 + 0.1 * jax.random.normal(ks[6], (C_OUT,), dtype=jnp.float32)
    beta = 0.1 * jax.random.normal(ks[7], (C_OUT,), dtype=jnp.float32)
    rmean = 0.1 * jax.random.normal(ks[8], (C_OUT,), dtype=jnp.float32)
    rvar = jnp.abs(1.0 + 0.1 * jax.random.normal(ks[9], (C_OUT,), dtype=jnp.float32))

    # small tiles so every tiled path is exercised at these demo shapes:
    # hw reduction (2 tiles), hwp tiles (2), channel reduction (pri 4 + x 1),
    # cout parallel axis (2).
    out = psp_module_forward(x, stage_ws, wb, gamma, beta, rmean, rvar,
                             sizes=SIZES, hw_tile=128, hwp_tile=256,
                             ch_tile=16, cout_tile=8)
    out = jax.block_until_ready(out)

    ref = _psp_reference(x, stage_ws, wb, gamma, beta, rmean, rvar, sizes=SIZES)
    assert out.shape == (N, C_OUT, H, W)
    # bf16 MXU operands (f32 accumulation) bound the error vs the f32 reference.
    max_err = float(jnp.max(jnp.abs(out - ref)))
    assert max_err < 6e-2, f"mismatch vs reference: max abs err = {max_err}"

    print("KERNEL_OK")
</pallas_src>

<mosaic_0001>
module attributes {stable_mosaic.version = 11 : i64} {
  func.func @_pool_stage_kernel(%arg0: i32, %arg1: i32, %arg2: memref<1x4x128xbf16, #tpu.memory_space<vmem>>, %arg3: memref<128x128xbf16, #tpu.memory_space<vmem>>, %arg4: memref<64x4xbf16, #tpu.memory_space<vmem>>, %arg5: memref<64x128xbf16, #tpu.memory_space<vmem>>, %arg6: memref<1x64x128xbf16, #tpu.memory_space<vmem>>, %arg7: memref<4x128xf32, #tpu.memory_space<vmem>>) attributes {dimension_semantics = [#tpu.dimension_semantics<parallel>, #tpu.dimension_semantics<arbitrary>], iteration_bounds = array<i64: 2, 2>, scalar_prefetch = 0 : i64, scratch_operands = 1 : i64, tpu.core_type = #tpu.core_type<tc>, window_params = [{transform_indices = @transform_0, window_bounds = array<i64: 1, 4, 128>}, {transform_indices = @transform_1, window_bounds = array<i64: 128, 128>}, {pipeline_mode = #tpu.pipeline_mode<synchronous>, transform_indices = @transform_2, window_bounds = array<i64: 64, 4>}, {pipeline_mode = #tpu.pipeline_mode<synchronous>, transform_indices = @transform_3, window_bounds = array<i64: 64, 128>}, {transform_indices = @transform_4, window_bounds = array<i64: 1, 64, 128>}]} {
    %c0_i32 = arith.constant 0 : i32
    %0 = arith.cmpi eq, %arg1, %c0_i32 : i32
    %1 = arith.extui %0 : i1 to i32
    %c0_i32_0 = arith.constant 0 : i32
    %2 = arith.cmpi ne, %1, %c0_i32_0 : i32
    scf.if %2 {
      %cst_10 = arith.constant 0.000000e+00 : f32
      %13 = vector.broadcast %cst_10 : f32 to vector<4x128xf32>
      %c0_11 = arith.constant 0 : index
      %c0_12 = arith.constant 0 : index
      %14 = vector.load %arg7[%c0_11, %c0_12] : memref<4x128xf32, #tpu.memory_space<vmem>>, vector<4x128xf32>
      tpu.vector_store %arg7[%c0_11, %c0_12], %13 {strides = array<i32>} : memref<4x128xf32, #tpu.memory_space<vmem>>, vector<4x128xf32>,
    } else {
    }
    %c0 = arith.constant 0 : index
    %c0_1 = arith.constant 0 : index
    %3 = vector.load %arg7[%c0, %c0_1] : memref<4x128xf32, #tpu.memory_space<vmem>>, vector<4x128xf32>
    %c0_2 = arith.constant 0 : index
    %c0_3 = arith.constant 0 : index
    %c0_4 = arith.constant 0 : index
    %4 = vector.load %arg2[%c0_2, %c0_3, %c0_4] : memref<1x4x128xbf16, #tpu.memory_space<vmem>>, vector<1x4x128xbf16>
    %5 = vector.shape_cast %4 : vector<1x4x128xbf16> to vector<4x128xbf16>
    %c0_5 = arith.constant 0 : index
    %c0_6 = arith.constant 0 : index
    %6 = vector.load %arg3[%c0_5, %c0_6] : memref<128x128xbf16, #tpu.memory_space<vmem>>, vector<128x128xbf16>
    %cst = arith.constant dense<0.000000e+00> : vector<4x128xf32>
    %7 = tpu.matmul %5, %6, %cst {dimension_numbers = #tpu.dot_dimension_numbers<[1], [0], [0], [1], [0, 0, 1, 1], [], []>} : vector<4x128xbf16>, vector<128x128xbf16>, vector<4x128xf32> -> vector<4x128xf32>
    %8 = arith.addf %3, %7 : vector<4x128xf32>
    %c0_7 = arith.constant 0 : index
    %c0_8 = arith.constant 0 : index
    %9 = vector.load %arg7[%c0_7, %c0_8] : memref<4x128xf32, #tpu.memory_space<vmem>>, vector<4x128xf32>
    tpu.vector_store %arg7[%c0_7, %c0_8], %8 {strides = array<i32>} : memref<4x128xf32, #tpu.memory_space<vmem>>, vector<4x128xf32>,
    %c1_i32 = arith.constant 1 : i32
    %10 = arith.cmpi eq, %arg1, %c1_i32 : i32
    %11 = arith.extui %10 : i1 to i32
    %c0_i32_9 = arith.constant 0 : i32
    %12 = arith.cmpi ne, %11, %c0_i32_9 : i32
    scf.if %12 {
      %c0_10 = arith.constant 0 : index
      %c0_11 = arith.constant 0 : index
      %13 = vector.load %arg4[%c0_10, %c0_11] : memref<64x4xbf16, #tpu.memory_space<vmem>>, vector<64x4xbf16>
      %c0_12 = arith.constant 0 : index
      %c0_13 = arith.constant 0 : index
      %14 = vector.load %arg7[%c0_12, %c0_13] : memref<4x128xf32, #tpu.memory_space<vmem>>, vector<4x128xf32>
      %15 = arith.truncf %14 : vector<4x128xf32> to vector<4x128xbf16>
      %cst_14 = arith.constant dense<0.000000e+00> : vector<64x128xf32>
      %16 = tpu.matmul %13, %15, %cst_14 {dimension_numbers = #tpu.dot_dimension_numbers<[1], [0], [0], [1], [0, 0, 1, 1], [], []>} : vector<64x4xbf16>, vector<4x128xbf16>, vector<64x128xf32> -> vector<64x128xf32>
      %c0_15 = arith.constant 0 : index
      %c0_16 = arith.constant 0 : index
      %17 = vector.load %arg5[%c0_15, %c0_16] : memref<64x128xbf16, #tpu.memory_space<vmem>>, vector<64x128xbf16>
      %18 = arith.extf %17 : vector<64x128xbf16> to vector<64x128xf32>
      %19 = arith.mulf %16, %18 : vector<64x128xf32>
      %20 = arith.truncf %19 : vector<64x128xf32> to vector<64x128xbf16>
      %c0_17 = arith.constant 0 : index
      %c0_18 = arith.constant 0 : index
      %c0_19 = arith.constant 0 : index
      %21 = vector.load %arg6[%c0_17, %c0_18, %c0_19] : memref<1x64x128xbf16, #tpu.memory_space<vmem>>, vector<1x64x128xbf16>
      %22 = vector.shape_cast %21 : vector<1x64x128xbf16> to vector<64x128xbf16>
      %23 = vector.shape_cast %20 : vector<64x128xbf16> to vector<1x64x128xbf16>
      tpu.vector_store %arg6[%c0_17, %c0_18, %c0_19], %23 {strides = array<i32>} : memref<1x64x128xbf16, #tpu.memory_space<vmem>>, vector<1x64x128xbf16>,
    } else {
    }
    return
  }
  func.func @transform_0(%arg0: i32, %arg1: i32) -> (i32, i32, i32) {
    %c0_i32 = arith.constant 0 : i32
    %c0_i32_0 = arith.constant 0 : i32
    return %arg0, %c0_i32, %arg1 : i32, i32, i32
  }
  func.func @transform_1(%arg0: i32, %arg1: i32) -> (i32, i32) {
    %c0_i32 = arith.constant 0 : i32
    %c0_i32_0 = arith.constant 0 : i32
    return %arg1, %c0_i32 : i32, i32
  }
  func.func @transform_2(%arg0: i32, %arg1: i32) -> (i32, i32) {
    %c0_i32 = arith.constant 0 : i32
    %c0_i32_0 = arith.constant 0 : i32
    %c0_i32_1 = arith.constant 0 : i32
    return %c0_i32, %c0_i32_0 : i32, i32
  }
  func.func @transform_3(%arg0: i32, %arg1: i32) -> (i32, i32) {
    %c0_i32 = arith.constant 0 : i32
    %c0_i32_0 = arith.constant 0 : i32
    %c0_i32_1 = arith.constant 0 : i32
    return %c0_i32, %c0_i32_0 : i32, i32
  }
  func.func @transform_4(%arg0: i32, %arg1: i32) -> (i32, i32, i32) {
    %c0_i32 = arith.constant 0 : i32
    %c0_i32_0 = arith.constant 0 : i32
    %c0_i32_1 = arith.constant 0 : i32
    return %arg0, %c0_i32, %c0_i32_0 : i32, i32, i32
  }
}

</mosaic_0001>

<llo_original>
// kernel: tpu_custom_call.1
$region0: #{tpu_custom_call.1}
  #allocation0 [shape = 'u32[]', space=smem, size = 0x4, offset = 0x4, fixed_abs, tag = 'smem constant byte address 0x4 - core index']
  #allocation1 [shape = 'u32[144,128]{1,0:T(1,128)}', space=vmem, size = 0x12000, scoped, tag = 'internal scratch']
  #allocation2 [shape = 'f32[4,128]{1,0:T(4,128)}', space=vmem, size = 0x800, scoped, tag = 'scratch operand']
  %s0 = inlined_call_operand.vmem [shape: bf16[2,4,256], index: 0, kind: input, shape index: {}]
  %s1 = inlined_call_operand.hbm [shape: bf16[256,128], index: 1, kind: input, shape index: {}]
  %s2 = inlined_call_operand.vmem [shape: bf16[64,4], index: 2, kind: input, shape index: {}]
  %s3 = inlined_call_operand.vmem [shape: bf16[64,128], index: 3, kind: input, shape index: {}]
  %s4 = inlined_call_operand.hbm [shape: bf16[2,64,128], index: 4, kind: output, shape index: {}]
  %s5 = sld [smem:[#allocation0]]
  $region61: #{tpu_custom_call.1} parent=0
    _
  %s7 = ssub.s32 1, %s5
  %s8 = scalar_select 0, %s7, %s5
  $region1: #{tpu_custom_call.1} parent=0
    #allocation3 [shape = 'u8[65536]{0}', space=vmem, size = 0x10000, scoped, tag = 'input window, operand 1']
    #allocation4 [shape = 's32[2]{0}', space=sflag, size = 0x8, scoped, tag = 'scoped memory for tpu_custom_call.1']
    #allocation5 [shape = 's32[2]{0}', space=sflag, size = 0x8, scoped, tag = 'scoped memory for tpu_custom_call.1']
    #allocation6 [shape = 'u8[32768]{0}', space=vmem, size = 0x8000, scoped, tag = 'output window, operand 0']
    %9 = vsyncpa [#allocation4], 0
    %s10 = scalar_lea.sflag [#allocation4], 1
    %11 = vsyncpa %s10, 0
    %12 = vsyncpa [#allocation5], 0
    %s13 = scalar_lea.sflag [#allocation5], 1
    %14 = vsyncpa %s13, 0
    loop: start=0, step=1, limit=6
    $region2: #{tpu_custom_call.1} parent=1 // loop_pre_header
      _
    $region3: #{tpu_custom_call.1} parent=1 // loop_header
      %s16 = sphi 0, %s20
      %p17 = scmp.ge.s32.totalorder %s16, 6
      %s23 = sphi 0, %s35
      %s24 = sphi 0, %s31
      %s25 = sphi 0, %s23
      %s26 = sphi 0, %s24
      %s27 = sphi 0, %s25
      %s28 = sphi 0, %s26
      %s40 = sphi 0, %s42
      %s43 = sphi 0, %s40
      %s44 = sphi 0, %s43
      %s60 = sphi 0, %s44
      %s66 = sphi 0, %s68
      %s69 = sphi 0, %s66
      %s70 = sphi 0, %s69
      %s86 = sphi 0, %s70
      %s90 = sphi 0, %s90
      %s92 = sphi 0, %s90
      %s93 = sphi 0, %s92
      %s107 = sphi 0, %s93
      %s111 = sphi 0, %s111
      %s113 = sphi 0, %s111
      %s114 = sphi 0, %s113
      %s128 = sphi 0, %s114
      %s134 = sphi 0, %s136
      %s137 = sphi 0, %s134
      %s138 = sphi 0, %s137
      %s154 = sphi 0, %s138
    $region4: #{tpu_custom_call.1} parent=1 // loop_header_branch
      %19 = sbr.rel (%p17) target = $region8
    $region5: #{tpu_custom_call.1} parent=1 // loop_body
      %s21 = ssub.s32 %s16, 1
      %s22 = ssub.s32 %s16, 2
      %s29 = sadd.s32 1, %s24
      %p30 = scmp.ge.s32.totalorder %s29, 2
      %s31 = scalar_select %p30, 0, %s29
      %s32 = sadd.s32 1, %s23
      %s33 = scalar_select %p30, %s32, %s23
      %p34 = scmp.ge.s32.totalorder %s33, 2
      %s35 = scalar_select %p34, 0, %s33
      %s36 = ssub.s32 %s23, %s35
      %s37 = ssub.s32 %s24, %s31
      %s38 = sor.u32 %s36, %s37
      %p39 = scmp.eq.s32.totalorder %s38, 0
      %s41 = sadd.s32 %s40, 1
      %s42 = scalar_select %p39, %s40, %s41
      %p45 = pneg %p39
      %p46 = scmp.eq.s32.totalorder %s16, 3
      %p47 = por %p45, %p46
      %p48 = scmp.ne.s32.totalorder %s40, %s43
      %p49 = scmp.eq.s32.totalorder %s16, 0
      %p50 = por %p48, %p49
      %p51 = scmp.ne.s32.totalorder %s40, %s43
      %p52 = scmp.eq.s32.totalorder %s21, 3
      %p53 = por %p51, %p52
      %p54 = scmp.ne.s32.totalorder %s43, %s44
      %p55 = scmp.eq.s32.totalorder %s21, 0
      %p56 = por %p54, %p55
      %p57 = scmp.ne.s32.totalorder %s43, %s44
      %p58 = scmp.eq.s32.totalorder %s22, 3
      %p59 = por %p57, %p58
      %p61 = scmp.ne.s32.totalorder %s44, %s60
      %p62 = scmp.eq.s32.totalorder %s22, 0
      %p63 = por %p61, %p62
      %s64 = ssub.s32 %s24, %s31
      %p65 = scmp.eq.s32.totalorder %s64, 0
      %s67 = sadd.s32 %s66, 1
      %s68 = scalar_select %p65, %s66, %s67
      %p71 = pneg %p65
      %p72 = scmp.eq.s32.totalorder %s16, 3
      %p73 = por %p71, %p72
      %p74 = scmp.ne.s32.totalorder %s66, %s69
      %p75 = scmp.eq.s32.totalorder %s16, 0
      %p76 = por %p74, %p75
      %p77 = scmp.ne.s32.totalorder %s66, %s69
      %p78 = scmp.eq.s32.totalorder %s21, 3
      %p79 = por %p77, %p78
      %p80 = scmp.ne.s32.totalorder %s69, %s70
      %p81 = scmp.eq.s32.totalorder %s21, 0
      %p82 = por %p80, %p81
      %p83 = scmp.ne.s32.totalorder %s69, %s70
      %p84 = scmp.eq.s32.totalorder %s22, 3
      %p85 = por %p83, %p84
      %p87 = scmp.ne.s32.totalorder %s70, %s86
      %p88 = scmp.eq.s32.totalorder %s22, 0
      %p89 = por %p87, %p88
      %s91 = sadd.s32 %s90, 1
      %p94 = scmp.eq.s32.totalorder %s16, 3
      %p95 = scmp.ne.s32.totalorder %s90, %s92
      %p96 = scmp.eq.s32.totalorder %s16, 0
      %p97 = por %p95, %p96
      %p98 = scmp.ne.s32.totalorder %s90, %s92
      %p99 = scmp.eq.s32.totalorder %s21, 3
      %p100 = por %p98, %p99
      %p101 = scmp.ne.s32.totalorder %s92, %s93
      %p102 = scmp.eq.s32.totalorder %s21, 0
      %p103 = por %p101, %p102
      %p104 = scmp.ne.s32.totalorder %s92, %s93
      %p105 = scmp.eq.s32.totalorder %s22, 3
      %p106 = por %p104, %p105
      %p108 = scmp.ne.s32.totalorder %s93, %s107
      %p109 = scmp.eq.s32.totalorder %s22, 0
      %p110 = por %p108, %p109
      %s112 = sadd.s32 %s111, 1
      %p115 = scmp.eq.s32.totalorder %s16, 3
      %p116 = scmp.ne.s32.totalorder %s111, %s113
      %p117 = scmp.eq.s32.totalorder %s16, 0
      %p118 = por %p116, %p117
      %p119 = scmp.ne.s32.totalorder %s111, %s113
      %p120 = scmp.eq.s32.totalorder %s21, 3
      %p121 = por %p119, %p120
      %p122 = scmp.ne.s32.totalorder %s113, %s114
      %p123 = scmp.eq.s32.totalorder %s21, 0
      %p124 = por %p122, %p123
      %p125 = scmp.ne.s32.totalorder %s113, %s114
      %p126 = scmp.eq.s32.totalorder %s22, 3
      %p127 = por %p125, %p126
      %p129 = scmp.ne.s32.totalorder %s114, %s128
      %p130 = scmp.eq.s32.totalorder %s22, 0
      %p131 = por %p129, %p130
      %s132 = ssub.s32 %s23, %s35
      %p133 = scmp.eq.s32.totalorder %s132, 0
      %s135 = sadd.s32 %s134, 1
      %s136 = scalar_select %p133, %s134, %s135
      %p139 = pneg %p133
      %p140 = scmp.eq.s32.totalorder %s16, 3
      %p141 = por %p139, %p140
      %p142 = scmp.ne.s32.totalorder %s134, %s137
      %p143 = scmp.eq.s32.totalorder %s16, 0
      %p144 = por %p142, %p143
      %p145 = scmp.ne.s32.totalorder %s134, %s137
      %p146 = scmp.eq.s32.totalorder %s21, 3
      %p147 = por %p145, %p146
      %p148 = scmp.ne.s32.totalorder %s137, %s138
      %p149 = scmp.eq.s32.totalorder %s21, 0
      %p150 = por %p148, %p149
      %p151 = scmp.ne.s32.totalorder %s137, %s138
      %p152 = scmp.eq.s32.totalorder %s22, 3
      %p153 = por %p151, %p152
      %p155 = scmp.ne.s32.totalorder %s138, %s154
      %p156 = scmp.eq.s32.totalorder %s22, 0
      %p157 = por %p155, %p156
      %p158 = scmp.le.s32.totalorder 1, %s16
      %p159 = scmp.lt.s32.totalorder %s16, 5
      %p160 = pnand %p158, %p159
      %p161 = pneg %p160
      // Predicated region
      $region9: #{tpu_custom_call.1} parent=5 // pred_check
        _
      $region10: #{tpu_custom_call.1} parent=5 // pred_check_branch
        %163 = sbr.rel (%p160) target = $region12
      $region11: #{tpu_custom_call.1} parent=5 // pred_region
        %s164 = ssub.s32 %s16, 1
        // Predicated region
        $region13: #{tpu_custom_call.1} parent=11 // pred_check
          %p165 = pneg %p103
        $region14: #{tpu_custom_call.1} parent=11 // pred_check_branch
          %167 = sbr.rel (%p165) target = $region16
        $region15: #{tpu_custom_call.1} parent=11 // pred_region
          _
        $region16: #{tpu_custom_call.1} parent=11 // pred_fallthru
          _
        // Predicated region
        $region17: #{tpu_custom_call.1} parent=11 // pred_check
          %p168 = pneg %p124
        $region18: #{tpu_custom_call.1} parent=11 // pred_check_branch
          %170 = sbr.rel (%p168) target = $region20
        $region19: #{tpu_custom_call.1} parent=11 // pred_region
          _
        $region20: #{tpu_custom_call.1} parent=11 // pred_fallthru
          _
      $region12: #{tpu_custom_call.1} parent=5 // pred_fallthru
        _
      %p171 = scmp.lt.s32.totalorder %s16, 4
      // Predicated region
      $region21: #{tpu_custom_call.1} parent=5 // pred_check
        %p172 = pneg %p171
      $region22: #{tpu_custom_call.1} parent=5 // pred_check_branch
        %174 = sbr.rel (%p172) target = $region24
      $region23: #{tpu_custom_call.1} parent=5 // pred_region
        // Predicated region
        $region25: #{tpu_custom_call.1} parent=23 // pred_check
          %p175 = pneg %p50
        $region26: #{tpu_custom_call.1} parent=23 // pred_check_branch
          %177 = sbr.rel (%p175) target = $region28
        $region27: #{tpu_custom_call.1} parent=23 // pred_region
          %p178 = scmp.lt.s32.totalorder %s23, 1
          %s179 = scalar_select %p178, %s23, 1
          %p180 = scmp.lt.s32.totalorder %s24, 1
          %s181 = scalar_select %p180, %s24, 1
          %s182 = smul.addr %s179, 2
          %s183 = sadd.s32 %s181, %s182
          %s184 = smul.addr %s183, 2
          %s185 = scalar_lea.vmem %s0, %s184
        $region28: #{tpu_custom_call.1} parent=23 // pred_fallthru
          _
        // Predicated region
        $region29: #{tpu_custom_call.1} parent=23 // pred_check
          %p186 = pneg %p76
        $region30: #{tpu_custom_call.1} parent=23 // pred_check_branch
          %188 = sbr.rel (%p186) target = $region32
        $region31: #{tpu_custom_call.1} parent=23 // pred_region
          %s189 = sand.u32 %s66, 1
          %s190 = scalar_lea.sflag [#allocation4], %s189
          %s191 = sand.u32 %s66, 1
          %s192 = smul.addr %s191, 64
          %s193 = scalar_lea.vmem [#allocation3], %s192
          %s194 = smul.u32 16, %s24
          %s196 = ssub.s32 1024, 1024
          %197 = vsyncadd %s190, %s196
          %s198 = smul.addr %s194, 64
          %s199 = scalar_lea.hbm %s1, %s198
          %s200 = sshll.u32 %s193, 4
          %s201 = int_to_ptr.vmem [resolvable:$true] %s200
          %206 = dma.hbm_to_vmem [thread:$0]  %s199, 1024, %s201, %s190, 64, 64, 4
        $region32: #{tpu_custom_call.1} parent=23 // pred_fallthru
          _
      $region24: #{tpu_custom_call.1} parent=5 // pred_fallthru
        _
      %p207 = scmp.le.s32.totalorder 1, %s16
      %p208 = scmp.lt.s32.totalorder %s16, 5
      %p209 = pnand %p207, %p208
      %p210 = pneg %p209
      // Predicated region
      $region33: #{tpu_custom_call.1} parent=5 // pred_check
        _
      $region34: #{tpu_custom_call.1} parent=5 // pred_check_branch
        %212 = sbr.rel (%p209) target = $region36
      $region35: #{tpu_custom_call.1} parent=5 // pred_region
        %s213 = ssub.s32 %s16, 1
        %s214 = sand.u32 %s69, 1
        %s215 = scalar_lea.sflag [#allocation4], %s214
        %s216 = sand.u32 %s69, 1
        %s217 = smul.addr %s216, 64
        %s218 = scalar_lea.vmem [#allocation3], %s217
        // Predicated region
        $region37: #{tpu_custom_call.1} parent=35 // pred_check
          %p219 = pneg %p82
        $region38: #{tpu_custom_call.1} parent=35 // pred_check_branch
          %221 = sbr.rel (%p219) target = $region40
        $region39: #{tpu_custom_call.1} parent=35 // pred_region
          %222 = dma.done %s215, 1024
        $region40: #{tpu_custom_call.1} parent=35 // pred_fallthru
          _
        %p223 = scmp.lt.s32.totalorder %s25, 1
        %s224 = scalar_select %p223, %s25, 1
        %p225 = scmp.lt.s32.totalorder %s26, 1
        %s226 = scalar_select %p225, %s26, 1
        %s227 = smul.addr %s224, 2
        %s228 = sadd.s32 %s226, %s227
        %s229 = smul.addr %s228, 2
        %s230 = scalar_lea.vmem %s0, %s229
        %p231 = pneg %p56
        %p232 = pneg %p53
        %s233 = sand.u32 %s69, 1
        %s234 = scalar_lea.sflag [#allocation4], %s233
        %s235 = sand.u32 %s69, 1
        %s236 = smul.addr %s235, 64
        %s237 = scalar_lea.vmem [#allocation3], %s236
        %p238 = pneg %p82
        %p239 = pneg %p79
        %p240 = pneg %p103
        %p241 = pneg %p100
        %p242 = pneg %p124
        %p243 = pneg %p121
        %p244 = pneg %p150
        %p245 = pneg %p147
        %s246 = sand.u32 %s137, 1
        %s247 = scalar_lea.sflag [#allocation5], %s246
        %s248 = sand.u32 %s137, 1
        %s249 = smul.addr %s248, 32
        %s250 = scalar_lea.vmem [#allocation6], %s249
        %p251 = scmp.lt.s32.totalorder %s25, 1
        %s252 = scalar_select %p251, %s25, 1
        %p253 = scmp.lt.s32.totalorder %s26, 1
        %s254 = scalar_select %p253, %s26, 1
        %s255 = smul.addr %s252, 2
        %s256 = sadd.s32 %s254, %s255
        %s257 = smul.addr %s256, 2
        %s258 = scalar_lea.vmem %s0, %s257
        %s259 = smul.u32 16, %s26
        %p261 = scmp.eq.s32.totalorder %s26, 0
        // Predicated region
        $region41: #{tpu_custom_call.1} parent=35 // pred_check
          %p262 = pneg %p261
        $region42: #{tpu_custom_call.1} parent=35 // pred_check_branch
          %264 = sbr.rel (%p262) target = $region44
        $region43: #{tpu_custom_call.1} parent=35 // pred_region
          %265 = vst [vmem:[#allocation2] sm:$0xf] 0.0
        $region44: #{tpu_custom_call.1} parent=35 // pred_fallthru
          _
        %v266 = vld [vmem:[#allocation2] sm:$0xf]
        %v267 = vld [vmem:[%s258] sm:$0x3]
        %v268 = vld [vmem:[%s218] sm:$0xf]
        %v269 = vld [vmem:[%s218 + $0x4] sm:$0xf]
        %v270 = vld [vmem:[%s218 + $0x8] sm:$0xf]
        %v271 = vld [vmem:[%s218 + $0xc] sm:$0xf]
        %v272 = vld [vmem:[%s218 + $0x10] sm:$0xf]
        %v273 = vld [vmem:[%s218 + $0x14] sm:$0xf]
        %v274 = vld [vmem:[%s218 + $0x18] sm:$0xf]
        %v275 = vld [vmem:[%s218 + $0x1c] sm:$0xf]
        %v276 = vld [vmem:[%s218 + $0x20] sm:$0xf]
        %v277 = vld [vmem:[%s218 + $0x24] sm:$0xf]
        %v278 = vld [vmem:[%s218 + $0x28] sm:$0xf]
        %v279 = vld [vmem:[%s218 + $0x2c] sm:$0xf]
        %v280 = vld [vmem:[%s218 + $0x30] sm:$0xf]
        %v281 = vld [vmem:[%s218 + $0x34] sm:$0xf]
        %v282 = vld [vmem:[%s218 + $0x38] sm:$0xf]
        %v283 = vld [vmem:[%s218 + $0x3c] sm:$0xf]
        %v300 = vunpack.c.l.b16 %v268
        %v301 = vunpack.c.l.b16 %v269
        %v302 = vunpack.c.l.b16 %v270
        %v303 = vunpack.c.l.b16 %v271
        %v304 = vunpack.c.l.b16 %v272
        %v305 = vunpack.c.l.b16 %v273
        %v306 = vunpack.c.l.b16 %v274
        %v307 = vunpack.c.l.b16 %v275
        %v308 = vunpack.c.l.b16 %v276
        %v309 = vunpack.c.l.b16 %v277
        %v310 = vunpack.c.l.b16 %v278
        %v311 = vunpack.c.l.b16 %v279
        %v312 = vunpack.c.l.b16 %v280
        %v313 = vunpack.c.l.b16 %v281
        %v314 = vunpack.c.l.b16 %v282
        %v315 = vunpack.c.l.b16 %v283
        %v316 = vpack.c.b16 %v301, %v300
        %v317 = vpack.c.b16 %v303, %v302
        %v318 = vpack.c.b16 %v305, %v304
        %v319 = vpack.c.b16 %v307, %v306
        %v320 = vpack.c.b16 %v309, %v308
        %v321 = vpack.c.b16 %v311, %v310
        %v322 = vpack.c.b16 %v313, %v312
        %v323 = vpack.c.b16 %v315, %v314
        %332 = vmatprep.subr.bf16.mxu0 0
        %333 = vmatpush1.bf16.msra.mxu0 %v316
        %334 = vmatprep.subr.bf16.mxu0 0
        %335 = vmatpush1.bf16.msra.mxu0 %v317
        %336 = vmatprep.subr.bf16.mxu0 0
        %337 = vmatpush1.bf16.msra.mxu0 %v318
        %338 = vmatprep.subr.bf16.mxu0 0
        %339 = vmatpush1.bf16.msra.mxu0 %v319
        %340 = vmatprep.subr.bf16.mxu0 0
        %341 = vmatpush1.bf16.msra.mxu0 %v320
        %342 = vmatprep.subr.bf16.mxu0 0
        %343 = vmatpush1.bf16.msra.mxu0 %v321
        %344 = vmatprep.subr.bf16.mxu0 0
        %345 = vmatpush1.bf16.msra.mxu0 %v322
        %346 = vmatprep.subr.bf16.mxu0 0
        %347 = vmatpush1.bf16.msra.mxu0 %v323
        %348 = vmatprep.subr.bf16.mxu0 0
        %349 = vmatpush1.bf16.msra.mxu0 0
        %350 = vmatprep.subr.bf16.mxu0 0
        %351 = vmatpush1.bf16.msra.mxu0 0
        %352 = vmatprep.subr.bf16.mxu0 0
        %353 = vmatpush1.bf16.msra.mxu0 0
        %354 = vmatprep.subr.bf16.mxu0 0
        %355 = vmatpush1.bf16.msra.mxu0 0
        %356 = vmatprep.subr.bf16.mxu0 0
        %357 = vmatpush1.bf16.msra.mxu0 0
        %358 = vmatprep.subr.bf16.mxu0 0
        %359 = vmatpush1.bf16.msra.mxu0 0
        %360 = vmatprep.subr.bf16.mxu0 0
        %361 = vmatpush1.bf16.msra.mxu0 0
        %362 = vmatprep.subr.bf16.mxu0 0
        %363 = vmatpush1.bf16.msra.mxu0 0
        %364 = vmatprep.mubr.bf16.mxu0 0
        %365 = vmatmul.mubr.bf16.gmra.mrb[0].mxu0 %v267
        %v366 = vpop.f32.mrb[0].mxu0
        %v367 = vadd.f32 0.0, %v366
        %v368 = vpop.f32.mrb[0].mxu0
        %v369 = vpop.f32.mrb[0].mxu0
        %v370 = vpop.f32.mrb[0].mxu0
        %371 = vdwg.mxu0
        %v372 = vadd.f32 %v266, %v367
        %373 = vst [vmem:[#allocation2] sm:$0xf] %v372
        %p374 = scmp.eq.s32.totalorder %s26, 1
        // Predicated region
        $region45: #{tpu_custom_call.1} parent=35 // pred_check
          %p375 = pneg %p374
        $region46: #{tpu_custom_call.1} parent=35 // pred_check_branch
          %377 = sbr.rel (%p375) target = $region48
        $region47: #{tpu_custom_call.1} parent=35 // pred_region
          %v378 = vld [vmem:[%s2] sm:$0xf]
          %v379 = vld [vmem:[%s2 + $0x4] sm:$0xf]
          %v380 = vld [vmem:[%s2 + $0x8] sm:$0xf]
          %v381 = vld [vmem:[%s2 + $0xc] sm:$0xf]
          %v382 = vld [vmem:[%s2 + $0x10] sm:$0xf]
          %v383 = vld [vmem:[%s2 + $0x14] sm:$0xf]
          %v384 = vld [vmem:[%s2 + $0x18] sm:$0xf]
          %v385 = vld [vmem:[%s2 + $0x1c] sm:$0xf]
          %v386 = vld [vmem:[#allocation2] sm:$0xf]
          %v387 = vpack.c.bf16 %v386, %v386
          %v396 = vunpack.c.l.b16 %v378
          %v397 = vunpack.c.l.b16 %v379
          %v398 = vunpack.c.l.b16 %v380
          %v399 = vunpack.c.l.b16 %v381
          %v400 = vunpack.c.l.b16 %v382
          %v401 = vunpack.c.l.b16 %v383
          %v402 = vunpack.c.l.b16 %v384
          %v403 = vunpack.c.l.b16 %v385
          %v404 = vpack.c.b16 %v397, %v396
          %v405 = vpack.c.b16 %v399, %v398
          %v406 = vpack.c.b16 %v401, %v400
          %v407 = vpack.c.b16 %v403, %v402
          %vm408 = vcmask 31744
          %v410 = vsel %vm408, %v404, 0
          %v413 = vsel %vm408, %v405, 0
          %v416 = vsel %vm408, %v406, 0
          %v419 = vsel %vm408, %v407, 0
          %vm421 = vcmask 1041408
          %v423 = vsel %vm421, %v387, 0
          %425 = vmatprep.subr.bf16.mxu0 0
          %426 = vmatpush1.bf16.msra.mxu0 %v423
          %427 = vmatprep.subr.bf16.mxu0 0
          %428 = vmatpush1.bf16.msra.mxu0 0
          %429 = vmatprep.subr.bf16.mxu0 0
          %430 = vmatpush1.bf16.msra.mxu0 0
          %431 = vmatprep.subr.bf16.mxu0 0
          %432 = vmatpush1.bf16.msra.mxu0 0
          %433 = vmatprep.subr.bf16.mxu0 0
          %434 = vmatpush1.bf16.msra.mxu0 0
          %435 = vmatprep.subr.bf16.mxu0 0
          %436 = vmatpush1.bf16.msra.mxu0 0
          %437 = vmatprep.subr.bf16.mxu0 0
          %438 = vmatpush1.bf16.msra.mxu0 0
          %439 = vmatprep.subr.bf16.mxu0 0
          %440 = vmatpush1.bf16.msra.mxu0 0
          %441 = vmatprep.subr.bf16.mxu0 0
          %442 = vmatpush1.bf16.msra.mxu0 0
          %443 = vmatprep.subr.bf16.mxu0 0
          %444 = vmatpush1.bf16.msra.mxu0 0
          %445 = vmatprep.subr.bf16.mxu0 0
          %446 = vmatpush1.bf16.msra.mxu0 0
          %447 = vmatprep.subr.bf16.mxu0 0
          %448 = vmatpush1.bf16.msra.mxu0 0
          %449 = vmatprep.subr.bf16.mxu0 0
          %450 = vmatpush1.bf16.msra.mxu0 0
          %451 = vmatprep.subr.bf16.mxu0 0
          %452 = vmatpush1.bf16.msra.mxu0 0
          %453 = vmatprep.subr.bf16.mxu0 0
          %454 = vmatpush1.bf16.msra.mxu0 0
          %455 = vmatprep.subr.bf16.mxu0 0
          %456 = vmatpush1.bf16.msra.mxu0 0
          %457 = vmatprep.mubr.bf16.mxu0 0
          %458 = vmatmul.mubr.bf16.gmra.mrb[0].mxu0 %v410
          %v459 = vpop.f32.mrb[0].mxu0
          %v460 = vadd.f32 0.0, %v459
          %v461 = vpop.f32.mrb[0].mxu0
          %v462 = vpop.f32.mrb[0].mxu0
          %v463 = vadd.f32 0.0, %v462
          %v464 = vpop.f32.mrb[0].mxu0
          %465 = vmatprep.mubr.bf16.mxu0 0
          %466 = vmatmul.mubr.bf16.gmra.mrb[0].mxu0 %v413
          %v467 = vpop.f32.mrb[0].mxu0
          %v468 = vadd.f32 0.0, %v467
          %v469 = vpop.f32.mrb[0].mxu0
          %v470 = vpop.f32.mrb[0].mxu0
          %v471 = vadd.f32 0.0, %v470
          %v472 = vpop.f32.mrb[0].mxu0
          %473 = vmatprep.mubr.bf16.mxu0 0
          %474 = vmatmul.mubr.bf16.gmra.mrb[0].mxu0 %v416
          %v475 = vpop.f32.mrb[0].mxu0
          %v476 = vadd.f32 0.0, %v475
          %v477 = vpop.f32.mrb[0].mxu0
          %v478 = vpop.f32.mrb[0].mxu0
          %v479 = vadd.f32 0.0, %v478
          %v480 = vpop.f32.mrb[0].mxu0
          %481 = vmatprep.mubr.bf16.mxu0 0
          %482 = vmatmul.mubr.bf16.gmra.mrb[0].mxu0 %v419
          %v483 = vpop.f32.mrb[0].mxu0
          %v484 = vadd.f32 0.0, %v483
          %v485 = vpop.f32.mrb[0].mxu0
          %v486 = vpop.f32.mrb[0].mxu0
          %v487 = vadd.f32 0.0, %v486
          %v488 = vpop.f32.mrb[0].mxu0
          %489 = vdwg.mxu0
          %v490 = vld [vmem:[%s3] sm:$0xf]
          %v491 = vld [vmem:[%s3 + $0x4] sm:$0xf]
          %v492 = vld [vmem:[%s3 + $0x8] sm:$0xf]
          %v493 = vld [vmem:[%s3 + $0xc] sm:$0xf]
          %v494 = vld [vmem:[%s3 + $0x10] sm:$0xf]
          %v495 = vld [vmem:[%s3 + $0x14] sm:$0xf]
          %v496 = vld [vmem:[%s3 + $0x18] sm:$0xf]
          %v497 = vld [vmem:[%s3 + $0x1c] sm:$0xf]
          %v498 = vunpack.c.l.bf16 %v490
          %v499 = vunpack.c.l.bf16 %v491
          %v500 = vunpack.c.l.bf16 %v492
          %v501 = vunpack.c.l.bf16 %v493
          %v502 = vunpack.c.l.bf16 %v494
          %v503 = vunpack.c.l.bf16 %v495
          %v504 = vunpack.c.l.bf16 %v496
          %v505 = vunpack.c.l.bf16 %v497
          %v506 = vmul.f32 %v460, %v498
          %v507 = vmul.f32 %v463, %v499
          %v508 = vmul.f32 %v468, %v500
          %v509 = vmul.f32 %v471, %v501
          %v510 = vmul.f32 %v476, %v502
          %v511 = vmul.f32 %v479, %v503
          %v512 = vmul.f32 %v484, %v504
          %v513 = vmul.f32 %v487, %v505
          %v514 = vpack.c.bf16 %v507, %v506
          %v515 = vpack.c.bf16 %v509, %v508
          %v516 = vpack.c.bf16 %v511, %v510
          %v517 = vpack.c.bf16 %v513, %v512
          %v522 = vunpack.c.l.b16 %v514
          %v523 = vunpack.c.h.b16 %v514
          %v524 = vunpack.c.l.b16 %v515
          %v525 = vunpack.c.h.b16 %v515
          %v526 = vunpack.c.l.b16 %v516
          %v527 = vunpack.c.h.b16 %v516
          %v528 = vunpack.c.l.b16 %v517
          %v529 = vunpack.c.h.b16 %v517
          %v530 = vpack.c.b16 %v522, %v522
          %v531 = vpack.c.b16 %v523, %v523
          %v532 = vpack.c.b16 %v524, %v524
          %v533 = vpack.c.b16 %v525, %v525
          %v534 = vpack.c.b16 %v526, %v526
          %v535 = vpack.c.b16 %v527, %v527
          %v536 = vpack.c.b16 %v528, %v528
          %v537 = vpack.c.b16 %v529, %v529
          %546 = vst [vmem:[%s250] sm:$0xf] %v530
          %547 = vst [vmem:[%s250 + $0x4] sm:$0xf] %v531
          %548 = vst [vmem:[%s250 + $0x8] sm:$0xf] %v532
          %549 = vst [vmem:[%s250 + $0xc] sm:$0xf] %v533
          %550 = vst [vmem:[%s250 + $0x10] sm:$0xf] %v534
          %551 = vst [vmem:[%s250 + $0x14] sm:$0xf] %v535
          %552 = vst [vmem:[%s250 + $0x18] sm:$0xf] %v536
          %553 = vst [vmem:[%s250 + $0x1c] sm:$0xf] %v537
        $region48: #{tpu_custom_call.1} parent=35 // pred_fallthru
          _
        %s554 = sand.u32 %s137, 1
        %s555 = scalar_lea.sflag [#allocation5], %s554
        %s556 = sand.u32 %s137, 1
        %s557 = smul.addr %s556, 32
        %s558 = scalar_lea.vmem [#allocation6], %s557
        // Predicated region
        $region49: #{tpu_custom_call.1} parent=35 // pred_check
          %p559 = pneg %p147
        $region50: #{tpu_custom_call.1} parent=35 // pred_check_branch
          %561 = sbr.rel (%p559) target = $region52
        $region51: #{tpu_custom_call.1} parent=35 // pred_region
          %s563 = ssub.s32 512, 512
          %564 = vsyncadd %s555, %s563
          %s565 = smul.addr %s25, 8
          %s566 = smul.addr %s565, 64
          %s567 = scalar_lea.hbm %s4, %s566
          %s568 = sshll.u32 %s558, 4
          %s569 = int_to_ptr.vmem [resolvable:$true] %s568
          %574 = dma.vmem_to_hbm [thread:$0]  %s569, 512, %s567, %s555, 64, 64, 4
        $region52: #{tpu_custom_call.1} parent=35 // pred_fallthru
          _
      $region36: #{tpu_custom_call.1} parent=5 // pred_fallthru
        _
      %p575 = scmp.le.s32.totalorder 2, %s16
      // Predicated region
      $region53: #{tpu_custom_call.1} parent=5 // pred_check
        %p576 = pneg %p575
      $region54: #{tpu_custom_call.1} parent=5 // pred_check_branch
        %578 = sbr.rel (%p576) target = $region56
      $region55: #{tpu_custom_call.1} parent=5 // pred_region
        %s579 = ssub.s32 %s16, 2
        // Predicated region
        $region57: #{tpu_custom_call.1} parent=55 // pred_check
          %p580 = pneg %p153
        $region58: #{tpu_custom_call.1} parent=55 // pred_check_branch
          %582 = sbr.rel (%p580) target = $region60
        $region59: #{tpu_custom_call.1} parent=55 // pred_region
          %s583 = sand.u32 %s138, 1
          %s584 = scalar_lea.sflag [#allocation5], %s583
          %s585 = sand.u32 %s138, 1
          %s586 = smul.addr %s585, 32
          %s587 = scalar_lea.vmem [#allocation6], %s586
          %588 = dma.done %s584, 512
        $region60: #{tpu_custom_call.1} parent=55 // pred_fallthru
          _
      $region56: #{tpu_custom_call.1} parent=5 // pred_fallthru
        _
    $region6: #{tpu_custom_call.1} parent=1 // loop_footer
      %s20 = sadd.s32 1, %s16
    $region7: #{tpu_custom_call.1} parent=1 // loop_footer_branch
      %15 = sbr.rel target = $region3
    $region8: #{tpu_custom_call.1} parent=1 // loop_exit
      _
    %589 = vsyncpa [#allocation4], 1
    %s590 = scalar_lea.sflag [#allocation4], 1
    %591 = vsyncpa %s590, 1
    %592 = vsyncpa [#allocation5], 1
    %s593 = scalar_lea.sflag [#allocation5], 1
    %594 = vsyncpa %s593, 1

</llo_original>
